<compile_context>
chip_gen: v7x
topology: tpu7x:2x2x1
jax: 0.10.0
libtpu: 0.0.40
codegen_flags: <defaults>
</compile_context>

<pallas_src>
import jax
import jax.numpy as jnp
from jax.experimental import pallas as pl
from jax.experimental.pallas import tpu as pltpu


# -----------------------------------------------------------------------------
# Pallas kernel: out(Cout, tm) = relu(W(Cout, K) @ P(K, tm) + b(Cout, 1))
# -----------------------------------------------------------------------------
def gemm_bias_relu_kernel(w_ref, p_ref, b_ref, o_ref):
    acc = jnp.dot(w_ref[...], p_ref[...], preferred_element_type=jnp.float32)
    o_ref[...] = jnp.maximum(acc + b_ref[...], 0.0).astype(o_ref.dtype)


def _pick_tm(M, *, max_tm=4096, multiple=128, min_grid=2):
    """Largest lane-aligned tile (multiple of 128, <= max_tm) dividing M.
    Prefer a tile that still leaves a >=min_grid grid (so v7x's two TensorCores
    can both get work) as long as it is at least half the largest candidate;
    otherwise just take the largest tile (v5e/v6e grids are serial loops)."""
    cands = [tm for tm in range(multiple, min(M, max_tm) + 1, multiple)
             if M % tm == 0]
    if not cands:  # rare: M not a multiple of 128 -> padded tile fallback
        return min(max_tm, pl.cdiv(M, multiple) * multiple)
    best = max(cands)
    good = [tm for tm in cands if M // tm >= min_grid]
    if good and max(good) * 2 >= best:
        return max(good)
    return best


def gemm_bias_relu(w, patches, b, *, out_dtype=jnp.float32):
    """w: (Cout, K); patches: (K, M); b: (Cout, 1) f32
       -> relu(w @ patches + b), out_dtype, shape (Cout, M)."""
    Cout, K = w.shape
    _, M = patches.shape

    tm = _pick_tm(M)
    M_pad = pl.cdiv(M, tm) * tm
    if M_pad != M:
        # Rare fallback (never hit when M is a multiple of 128, which holds for
        # the test shapes and the 224x224 spec shape).
        patches = jnp.pad(patches, ((0, 0), (0, M_pad - M)))

    cost = pl.CostEstimate(
        flops=2 * M_pad * K * Cout,
        transcendentals=0,
        bytes_accessed=(K * M_pad * patches.dtype.itemsize
                        + Cout * K * w.dtype.itemsize
                        + Cout * b.dtype.itemsize
                        + Cout * M_pad * jnp.dtype(out_dtype).itemsize),
    )

    out = pl.pallas_call(
        gemm_bias_relu_kernel,
        out_shape=jax.ShapeDtypeStruct((Cout, M_pad), out_dtype),
        grid_spec=pltpu.PrefetchScalarGridSpec(
            num_scalar_prefetch=0,
            grid=(M_pad // tm,),
            in_specs=[
                pl.BlockSpec((Cout, K), lambda i: (0, 0)),   # folded weight (resident)
                pl.BlockSpec((K, tm), lambda i: (0, i)),     # patch tile (streamed)
                pl.BlockSpec((Cout, 1), lambda i: (0, 0)),   # folded bias  (resident)
            ],
            out_specs=pl.BlockSpec((Cout, tm), lambda i: (0, i)),  # lane-dense
        ),
        compiler_params=pltpu.CompilerParams(
            dimension_semantics=("parallel",),
            vmem_limit_bytes=32 * 1024 * 1024),
        cost_estimate=cost,
    )(w, patches, b)

    return out[:, :M] if M_pad != M else out


# -----------------------------------------------------------------------------
# Plain-JAX glue: im2col (K-major) + weight folding + NCHW packing
# -----------------------------------------------------------------------------
def im2col_nchw_kmajor(x, kh, kw, stride, pad):
    """x: (N, C, H, W) -> patches (C*KH*KW, N*OH*OW).
    K order (C, KH, KW) matches PyTorch weight.reshape(Cout, Cin*KH*KW);
    M order (N, OH, OW) matches the (Cout, N, OH, OW) output reshape."""
    N, C, H, W = x.shape
    xp = jnp.pad(x, ((0, 0), (0, 0), (pad, pad), (pad, pad)))
    OH = (H + 2 * pad - kh) // stride + 1
    OW = (W + 2 * pad - kw) // stride + 1
    cols = []
    for i in range(kh):
        for j in range(kw):
            cols.append(xp[:, :, i:i + stride * OH:stride, j:j + stride * OW:stride])
    p = jnp.stack(cols, axis=2)                 # (N, C, KH*KW, OH, OW)
    p = jnp.transpose(p, (1, 2, 0, 3, 4))       # (C, KH*KW, N, OH, OW)
    return p.reshape(C * kh * kw, N * OH * OW), OH, OW


def model_forward(x, params, *, compute_dtype=jnp.bfloat16):
    """x: (N, 3, H, W) f32 -> (N, 64, OH, OW) f32  (matches PyTorch Model.forward)."""
    (w1, b1), (w2, b2), (w3, b3) = params
    Cout, Cin, KH, KW = w1.shape
    stride, pad = 2, 3

    def to_mat(w):                               # (Cout,Cin,KH,KW) -> (Cout, K)
        return w.reshape(Cout, Cin * KH * KW)

    # Fold the three convolutions into one (exact in real arithmetic); fold in
    # f32, then cast the single folded weight to the MXU compute dtype.
    w_fold = (to_mat(w1) - to_mat(w2) + to_mat(w3)).astype(compute_dtype)
    b_fold = (b1 - b2 + b3).reshape(Cout, 1).astype(jnp.float32)

    # Cast the input first so the materialized patch matrix is built in bf16
    # (elementwise cast commutes with the pad/gather/reshape in im2col).
    patches, OH, OW = im2col_nchw_kmajor(x.astype(compute_dtype), KH, KW, stride, pad)
    N = x.shape[0]

    out_flat = gemm_bias_relu(w_fold, patches, b_fold)      # (Cout, N*OH*OW)
    out = out_flat.reshape(Cout, N, OH, OW)
    return jnp.transpose(out, (1, 0, 2, 3))                  # NCHW


def make_params(key, cout=64, cin=3, kh=7, kw=7):
    """Deterministic Conv2d-style init (uniform in +/- 1/sqrt(fan_in))."""
    fan_in = cin * kh * kw
    bound = 1.0 / jnp.sqrt(fan_in)
    params = []
    for i in range(3):
        kw_key, kb_key = jax.random.split(jax.random.fold_in(key, i))
        w = jax.random.uniform(kw_key, (cout, cin, kh, kw), jnp.float32, -bound, bound)
        b = jax.random.uniform(kb_key, (cout,), jnp.float32, -bound, bound)
        params.append((w, b))
    return params


# -----------------------------------------------------------------------------
# Reference (pure JAX, f32) to sanity-check the kernel
# -----------------------------------------------------------------------------
def reference_forward(x, params):
    def conv(x, w, b):
        y = jax.lax.conv_general_dilated(
            x, w, window_strides=(2, 2), padding=((3, 3), (3, 3)),
            dimension_numbers=("NCHW", "OIHW", "NCHW"))
        return y + b[None, :, None, None]
    (w1, b1), (w2, b2), (w3, b3) = params
    v4 = conv(x, w1, b1) - conv(x, w2, b2) + conv(x, w3, b3)
    return jnp.maximum(v4, 0.0)


if __name__ == "__main__":
    key = jax.random.PRNGKey(0)
    k_x, k_p = jax.random.split(key)

    # Small shapes consistent with the module: N=2, Cin=3, H=W=16 -> out (2, 64, 8, 8)
    x = jax.random.normal(k_x, (2, 3, 16, 16), jnp.float32)
    params = make_params(k_p)

    out = jax.block_until_ready(model_forward(x, params))
    ref = jax.block_until_ready(reference_forward(x, params))

    assert out.shape == (2, 64, 8, 8), out.shape
    # bf16 MXU inputs with f32 accumulation: tolerance relaxed vs the pure-f32
    # reference (error is ~1e-3 at these scales; 3e-2 leaves ample margin).
    assert jnp.allclose(out, ref, atol=3e-2, rtol=3e-2), float(jnp.max(jnp.abs(out - ref)))

    print("KERNEL_OK")
</pallas_src>

<mosaic_0001>
module attributes {stable_mosaic.version = 11 : i64} {
  func.func @gemm_bias_relu_kernel(%arg0: i32, %arg1: memref<64x147xbf16, #tpu.memory_space<vmem>>, %arg2: memref<147x128xbf16, #tpu.memory_space<vmem>>, %arg3: memref<64x1xf32, #tpu.memory_space<vmem>>, %arg4: memref<64x128xf32, #tpu.memory_space<vmem>>) attributes {dimension_semantics = [#tpu.dimension_semantics<parallel>], iteration_bounds = array<i64: 1>, scalar_prefetch = 0 : i64, scratch_operands = 0 : i64, tpu.core_type = #tpu.core_type<tc>, window_params = [{pipeline_mode = #tpu.pipeline_mode<synchronous>, transform_indices = @transform_0, window_bounds = array<i64: 64, 147>}, {transform_indices = @transform_1, window_bounds = array<i64: 147, 128>}, {pipeline_mode = #tpu.pipeline_mode<synchronous>, transform_indices = @transform_2, window_bounds = array<i64: 64, 1>}, {transform_indices = @transform_3, window_bounds = array<i64: 64, 128>}]} {
    %c0 = arith.constant 0 : index
    %c0_0 = arith.constant 0 : index
    %0 = vector.load %arg1[%c0, %c0_0] : memref<64x147xbf16, #tpu.memory_space<vmem>>, vector<64x147xbf16>
    %c0_1 = arith.constant 0 : index
    %c0_2 = arith.constant 0 : index
    %1 = vector.load %arg2[%c0_1, %c0_2] : memref<147x128xbf16, #tpu.memory_space<vmem>>, vector<147x128xbf16>
    %cst = arith.constant dense<0.000000e+00> : vector<64x128xf32>
    %2 = tpu.matmul %0, %1, %cst {dimension_numbers = #tpu.dot_dimension_numbers<[1], [0], [0], [1], [0, 0, 1, 1], [], []>} : vector<64x147xbf16>, vector<147x128xbf16>, vector<64x128xf32> -> vector<64x128xf32>
    %c0_3 = arith.constant 0 : index
    %c0_4 = arith.constant 0 : index
    %3 = vector.load %arg3[%c0_3, %c0_4] : memref<64x1xf32, #tpu.memory_space<vmem>>, vector<64x1xf32>
    %4 = vector.broadcast %3 : vector<64x1xf32> to vector<64x128xf32>
    %5 = arith.addf %2, %4 : vector<64x128xf32>
    %cst_5 = arith.constant 0.000000e+00 : f32
    %6 = vector.broadcast %cst_5 : f32 to vector<64x128xf32>
    %7 = arith.maximumf %5, %6 : vector<64x128xf32>
    %c0_6 = arith.constant 0 : index
    %c0_7 = arith.constant 0 : index
    %8 = vector.load %arg4[%c0_6, %c0_7] : memref<64x128xf32, #tpu.memory_space<vmem>>, vector<64x128xf32>
    tpu.vector_store %arg4[%c0_6, %c0_7], %7 {strides = array<i32>} : memref<64x128xf32, #tpu.memory_space<vmem>>, vector<64x128xf32>,
    return
  }
  func.func @transform_0(%arg0: i32) -> (i32, i32) {
    %c0_i32 = arith.constant 0 : i32
    %c0_i32_0 = arith.constant 0 : i32
    %c0_i32_1 = arith.constant 0 : i32
    return %c0_i32, %c0_i32_0 : i32, i32
  }
  func.func @transform_1(%arg0: i32) -> (i32, i32) {
    %c0_i32 = arith.constant 0 : i32
    %c0_i32_0 = arith.constant 0 : i32
    return %c0_i32, %arg0 : i32, i32
  }
  func.func @transform_2(%arg0: i32) -> (i32, i32) {
    %c0_i32 = arith.constant 0 : i32
    %c0_i32_0 = arith.constant 0 : i32
    %c0_i32_1 = arith.constant 0 : i32
    return %c0_i32, %c0_i32_0 : i32, i32
  }
  func.func @transform_3(%arg0: i32) -> (i32, i32) {
    %c0_i32 = arith.constant 0 : i32
    %c0_i32_0 = arith.constant 0 : i32
    return %c0_i32, %arg0 : i32, i32
  }
}

</mosaic_0001>

<llo_original>
// kernel: tpu_custom_call.1
$region0: #{tpu_custom_call.1}
  #allocation0 [shape = 'u32[]', space=smem, size = 0x4, offset = 0x4, fixed_abs, tag = 'smem constant byte address 0x4 - core index']
  #allocation1 [shape = 'u32[144,128]{1,0:T(1,128)}', space=vmem, size = 0x12000, scoped, tag = 'internal scratch']
  %s0 = inlined_call_operand.vmem [shape: bf16[64,147], index: 0, kind: input, shape index: {}]
  %s1 = inlined_call_operand.hbm [shape: bf16[147,128], index: 1, kind: input, shape index: {}]
  %s2 = inlined_call_operand.vmem [shape: f32[64,1], index: 2, kind: input, shape index: {}]
  %s3 = inlined_call_operand.hbm [shape: f32[64,128], index: 3, kind: output, shape index: {}]
  %s4 = sld [smem:[#allocation0]]
  $region26: #{tpu_custom_call.1} parent=0
    _
  %s6 = ssub.s32 1, %s4
  %s7 = scalar_select 0, %s6, %s4
  $region1: #{tpu_custom_call.1} parent=0
    #allocation2 [shape = 'u8[38912]{0}', space=vmem, size = 0x9800, scoped, tag = 'input window, operand 1, single buffered']
    #allocation3 [shape = 's32[1]{0}', space=sflag, size = 0x4, scoped, tag = 'scoped memory for tpu_custom_call.1']
    #allocation4 [shape = 's32[1]{0}', space=sflag, size = 0x4, scoped, tag = 'scoped memory for tpu_custom_call.1']
    #allocation5 [shape = 'u8[32768]{0}', space=vmem, size = 0x8000, scoped, tag = 'output window, operand 0, single buffered']
    %8 = vsyncpa [#allocation3], 0
    %9 = vsyncpa [#allocation4], 0
    // Predicated region
    $region2: #{tpu_custom_call.1} parent=1 // pred_check
      _
    $region3: #{tpu_custom_call.1} parent=1 // pred_check_branch
      %11 = sbr.rel (0) target = $region5
    $region4: #{tpu_custom_call.1} parent=1 // pred_region
      _
    $region5: #{tpu_custom_call.1} parent=1 // pred_fallthru
      _
    // Predicated region
    $region6: #{tpu_custom_call.1} parent=1 // pred_check
      _
    $region7: #{tpu_custom_call.1} parent=1 // pred_check_branch
      %13 = sbr.rel (0) target = $region9
    $region8: #{tpu_custom_call.1} parent=1 // pred_region
      %s15 = ssub.s32 1216, 1216
      %16 = vsyncadd [#allocation3], %s15
      %s17 = sshll.u32 [#allocation2], 4
      %s18 = int_to_ptr.vmem [resolvable:$true] %s17
      %23 = dma.hbm_to_vmem [thread:$0]  %s1, 1216, %s18, [#allocation3], 64, 64, 4
    $region9: #{tpu_custom_call.1} parent=1 // pred_fallthru
      _
    // Predicated region
    $region10: #{tpu_custom_call.1} parent=1 // pred_check
      _
    $region11: #{tpu_custom_call.1} parent=1 // pred_check_branch
      %25 = sbr.rel (0) target = $region13
    $region12: #{tpu_custom_call.1} parent=1 // pred_region
      _
    $region13: #{tpu_custom_call.1} parent=1 // pred_fallthru
      _
    // Predicated region
    $region14: #{tpu_custom_call.1} parent=1 // pred_check
      _
    $region15: #{tpu_custom_call.1} parent=1 // pred_check_branch
      %27 = sbr.rel (0) target = $region17
    $region16: #{tpu_custom_call.1} parent=1 // pred_region
      %28 = dma.done [#allocation3], 1216
    $region17: #{tpu_custom_call.1} parent=1 // pred_fallthru
      _
    %v30 = vld [vmem:[%s0] sm:$0xff]
    %v31 = vld [vmem:[%s0 + $0x8] sm:$0xff]
    %v32 = vld [vmem:[%s0 + $0x10] sm:$0xff]
    %v33 = vld [vmem:[%s0 + $0x18] sm:$0xff]
    %v34 = vld [vmem:[%s0 + $0x20] sm:$0xff]
    %v35 = vld [vmem:[%s0 + $0x28] sm:$0xff]
    %v36 = vld [vmem:[%s0 + $0x30] sm:$0xff]
    %v37 = vld [vmem:[%s0 + $0x38] sm:$0xff]
    %v38 = vld [vmem:[#allocation2] sm:$0xf]
    %v39 = vld [vmem:[#allocation2 + $0x4] sm:$0xf]
    %v40 = vld [vmem:[#allocation2 + $0x8] sm:$0xf]
    %v41 = vld [vmem:[#allocation2 + $0xc] sm:$0xf]
    %v42 = vld [vmem:[#allocation2 + $0x10] sm:$0xf]
    %v43 = vld [vmem:[#allocation2 + $0x14] sm:$0xf]
    %v44 = vld [vmem:[#allocation2 + $0x18] sm:$0xf]
    %v45 = vld [vmem:[#allocation2 + $0x1c] sm:$0xf]
    %v46 = vld [vmem:[#allocation2 + $0x20] sm:$0xf]
    %v47 = vld [vmem:[#allocation2 + $0x24] sm:$0xf]
    %v48 = vld [vmem:[#allocation2 + $0x28] sm:$0xf]
    %v49 = vld [vmem:[#allocation2 + $0x2c] sm:$0xf]
    %v50 = vld [vmem:[#allocation2 + $0x30] sm:$0xf]
    %v51 = vld [vmem:[#allocation2 + $0x34] sm:$0xf]
    %v52 = vld [vmem:[#allocation2 + $0x38] sm:$0xf]
    %v53 = vld [vmem:[#allocation2 + $0x3c] sm:$0xf]
    %v54 = vld [vmem:[#allocation2 + $0x40] sm:$0xf]
    %v55 = vld [vmem:[#allocation2 + $0x44] sm:$0xf]
    %v56 = vld [vmem:[#allocation2 + $0x48] sm:$0x3]
    %v57 = vld [vmem:[%s2] sm:$0xff]
    %v58 = vld [vmem:[%s2 + $0x8] sm:$0xff]
    %v59 = vld [vmem:[%s2 + $0x10] sm:$0xff]
    %v60 = vld [vmem:[%s2 + $0x18] sm:$0xff]
    %v61 = vld [vmem:[%s2 + $0x20] sm:$0xff]
    %v62 = vld [vmem:[%s2 + $0x28] sm:$0xff]
    %v63 = vld [vmem:[%s2 + $0x30] sm:$0xff]
    %v64 = vld [vmem:[%s2 + $0x38] sm:$0xff]
    %66 = vset.pattern.permute.xlu0 0
    %67 = vperm.xlu0 %66, %v57
    %v68 = vpop.permute.xlu0 %67
    %71 = vset.pattern.permute.xlu0 0
    %72 = vperm.xlu0 %71, %v58
    %v73 = vpop.permute.xlu0 %72
    %76 = vset.pattern.permute.xlu0 0
    %77 = vperm.xlu0 %76, %v59
    %v78 = vpop.permute.xlu0 %77
    %81 = vset.pattern.permute.xlu0 0
    %82 = vperm.xlu0 %81, %v60
    %v83 = vpop.permute.xlu0 %82
    %86 = vset.pattern.permute.xlu0 0
    %87 = vperm.xlu0 %86, %v61
    %v88 = vpop.permute.xlu0 %87
    %91 = vset.pattern.permute.xlu0 0
    %92 = vperm.xlu0 %91, %v62
    %v93 = vpop.permute.xlu0 %92
    %96 = vset.pattern.permute.xlu0 0
    %97 = vperm.xlu0 %96, %v63
    %v98 = vpop.permute.xlu0 %97
    %101 = vset.pattern.permute.xlu0 0
    %102 = vperm.xlu0 %101, %v64
    %v103 = vpop.permute.xlu0 %102
    %v113 = vunpack.c.l.b16 %v30
    %v114 = vunpack.c.h.b16 %v30
    %v115 = vunpack.c.l.b16 %v31
    %v116 = vunpack.c.h.b16 %v31
    %v117 = vunpack.c.l.b16 %v32
    %v118 = vunpack.c.h.b16 %v32
    %v119 = vunpack.c.l.b16 %v33
    %v120 = vunpack.c.h.b16 %v33
    %v121 = vunpack.c.l.b16 %v34
    %v122 = vunpack.c.h.b16 %v34
    %v123 = vunpack.c.l.b16 %v35
    %v124 = vunpack.c.h.b16 %v35
    %v125 = vunpack.c.l.b16 %v36
    %v126 = vunpack.c.h.b16 %v36
    %v127 = vunpack.c.l.b16 %v37
    %v128 = vunpack.c.h.b16 %v37
    %v129 = vpack.c.b16 %v115, %v113
    %v130 = vpack.c.b16 %v116, %v114
    %v131 = vpack.c.b16 %v119, %v117
    %v132 = vpack.c.b16 %v120, %v118
    %v133 = vpack.c.b16 %v123, %v121
    %v134 = vpack.c.b16 %v124, %v122
    %v135 = vpack.c.b16 %v127, %v125
    %v136 = vpack.c.b16 %v128, %v126
    %v160 = vunpack.c.l.b16 %v38
    %v161 = vunpack.c.l.b16 %v39
    %v162 = vunpack.c.l.b16 %v40
    %v163 = vunpack.c.l.b16 %v41
    %v164 = vunpack.c.l.b16 %v42
    %v165 = vunpack.c.l.b16 %v43
    %v166 = vunpack.c.l.b16 %v44
    %v167 = vunpack.c.l.b16 %v45
    %v168 = vunpack.c.l.b16 %v46
    %v169 = vunpack.c.l.b16 %v47
    %v170 = vunpack.c.l.b16 %v48
    %v171 = vunpack.c.l.b16 %v49
    %v172 = vunpack.c.l.b16 %v50
    %v173 = vunpack.c.l.b16 %v51
    %v174 = vunpack.c.l.b16 %v52
    %v175 = vunpack.c.l.b16 %v53
    %v176 = vunpack.c.l.b16 %v54
    %v177 = vunpack.c.l.b16 %v55
    %v178 = vunpack.c.l.b16 %v56
    %v179 = vpack.c.b16 %v161, %v160
    %v180 = vpack.c.b16 %v163, %v162
    %v181 = vpack.c.b16 %v165, %v164
    %v182 = vpack.c.b16 %v167, %v166
    %v183 = vpack.c.b16 %v169, %v168
    %v184 = vpack.c.b16 %v171, %v170
    %v185 = vpack.c.b16 %v173, %v172
    %v186 = vpack.c.b16 %v175, %v174
    %v187 = vpack.c.b16 %v177, %v176
    %v188 = vpack.c.b16 %v178, %v178
    %vm198 = vcmask 154624
    %v200 = vsel %vm198, %v130, 0
    %v203 = vsel %vm198, %v132, 0
    %v206 = vsel %vm198, %v134, 0
    %v209 = vsel %vm198, %v136, 0
    %vm211 = vcmask 1040384
    %vm212 = vcmask 1041408
    %v213 = vsel %vm211, 4294967295, 65535
    %v214 = vsel %vm212, %v213, 0
    %v216 = vand.u32 %v188, %v214
    %218 = vmatprep.subr.bf16.mxu0 0
    %219 = vmatpush1.bf16.msra.mxu0 %v179
    %220 = vmatprep.subr.bf16.mxu0 0
    %221 = vmatpush1.bf16.msra.mxu0 %v180
    %222 = vmatprep.subr.bf16.mxu0 0
    %223 = vmatpush1.bf16.msra.mxu0 %v181
    %224 = vmatprep.subr.bf16.mxu0 0
    %225 = vmatpush1.bf16.msra.mxu0 %v182
    %226 = vmatprep.subr.bf16.mxu0 0
    %227 = vmatpush1.bf16.msra.mxu0 %v183
    %228 = vmatprep.subr.bf16.mxu0 0
    %229 = vmatpush1.bf16.msra.mxu0 %v184
    %230 = vmatprep.subr.bf16.mxu0 0
    %231 = vmatpush1.bf16.msra.mxu0 %v185
    %232 = vmatprep.subr.bf16.mxu0 0
    %233 = vmatpush1.bf16.msra.mxu0 %v186
    %234 = vmatprep.subr.bf16.mxu0 0
    %235 = vmatpush1.bf16.msra.mxu0 %v187
    %236 = vmatprep.subr.bf16.mxu0 0
    %237 = vmatpush1.bf16.msra.mxu0 %v216
    %238 = vmatprep.subr.bf16.mxu0 0
    %239 = vmatpush1.bf16.msra.mxu0 0
    %240 = vmatprep.subr.bf16.mxu0 0
    %241 = vmatpush1.bf16.msra.mxu0 0
    %242 = vmatprep.subr.bf16.mxu0 0
    %243 = vmatpush1.bf16.msra.mxu0 0
    %244 = vmatprep.subr.bf16.mxu0 0
    %245 = vmatpush1.bf16.msra.mxu0 0
    %246 = vmatprep.subr.bf16.mxu0 0
    %247 = vmatpush1.bf16.msra.mxu0 0
    %248 = vmatprep.subr.bf16.mxu0 0
    %249 = vmatpush1.bf16.msra.mxu0 0
    %250 = vmatprep.mubr.bf16.mxu0 %v200
    %251 = vmatmul.mubr.bf16.gmra.mrb[0].mxu0 %v129
    %v252 = vpop.f32.mrb[0].mxu0
    %v253 = vadd.f32 %v68, %v252
    %v254 = vpop.f32.mrb[0].mxu0
    %v255 = vpop.f32.mrb[0].mxu0
    %v256 = vadd.f32 %v73, %v255
    %v257 = vpop.f32.mrb[0].mxu0
    %258 = vmatprep.mubr.bf16.mxu0 %v203
    %259 = vmatmul.mubr.bf16.gmra.mrb[0].mxu0 %v131
    %v260 = vpop.f32.mrb[0].mxu0
    %v261 = vadd.f32 %v78, %v260
    %v262 = vpop.f32.mrb[0].mxu0
    %v263 = vpop.f32.mrb[0].mxu0
    %v264 = vadd.f32 %v83, %v263
    %v265 = vpop.f32.mrb[0].mxu0
    %266 = vmatprep.mubr.bf16.mxu0 %v206
    %267 = vmatmul.mubr.bf16.gmra.mrb[0].mxu0 %v133
    %v268 = vpop.f32.mrb[0].mxu0
    %v269 = vadd.f32 %v88, %v268
    %v270 = vpop.f32.mrb[0].mxu0
    %v271 = vpop.f32.mrb[0].mxu0
    %v272 = vadd.f32 %v93, %v271
    %v273 = vpop.f32.mrb[0].mxu0
    %274 = vmatprep.mubr.bf16.mxu0 %v209
    %275 = vmatmul.mubr.bf16.gmra.mrb[0].mxu0 %v135
    %v276 = vpop.f32.mrb[0].mxu0
    %v277 = vadd.f32 %v98, %v276
    %v278 = vpop.f32.mrb[0].mxu0
    %v279 = vpop.f32.mrb[0].mxu0
    %v280 = vadd.f32 %v103, %v279
    %v281 = vpop.f32.mrb[0].mxu0
    %282 = vdwg.mxu0
    %v283 = vmax.f32 %v253, 0.0
    %v284 = vmax.f32 %v256, 0.0
    %v285 = vmax.f32 %v261, 0.0
    %v286 = vmax.f32 %v264, 0.0
    %v287 = vmax.f32 %v269, 0.0
    %v288 = vmax.f32 %v272, 0.0
    %v289 = vmax.f32 %v277, 0.0
    %v290 = vmax.f32 %v280, 0.0
    %291 = vst [vmem:[#allocation5] sm:$0xff] %v283
    %292 = vst [vmem:[#allocation5 + $0x8] sm:$0xff] %v284
    %293 = vst [vmem:[#allocation5 + $0x10] sm:$0xff] %v285
    %294 = vst [vmem:[#allocation5 + $0x18] sm:$0xff] %v286
    %295 = vst [vmem:[#allocation5 + $0x20] sm:$0xff] %v287
    %296 = vst [vmem:[#allocation5 + $0x28] sm:$0xff] %v288
    %297 = vst [vmem:[#allocation5 + $0x30] sm:$0xff] %v289
    %298 = vst [vmem:[#allocation5 + $0x38] sm:$0xff] %v290
    // Predicated region
    $region18: #{tpu_custom_call.1} parent=1 // pred_check
      _
    $region19: #{tpu_custom_call.1} parent=1 // pred_check_branch
      %300 = sbr.rel (0) target = $region21
    $region20: #{tpu_custom_call.1} parent=1 // pred_region
      %s302 = ssub.s32 1024, 1024
      %303 = vsyncadd [#allocation4], %s302
      %s304 = sshll.u32 [#allocation5], 4
      %s305 = int_to_ptr.vmem [resolvable:$true] %s304
      %310 = dma.vmem_to_hbm [thread:$0]  %s305, 1024, %s3, [#allocation4], 128, 128, 8
    $region21: #{tpu_custom_call.1} parent=1 // pred_fallthru
      _
    // Predicated region
    $region22: #{tpu_custom_call.1} parent=1 // pred_check
      _
    $region23: #{tpu_custom_call.1} parent=1 // pred_check_branch
      %312 = sbr.rel (0) target = $region25
    $region24: #{tpu_custom_call.1} parent=1 // pred_region
      %313 = dma.done [#allocation4], 1024
    $region25: #{tpu_custom_call.1} parent=1 // pred_fallthru
      _
    %314 = vsyncpa [#allocation3], 1
    %315 = vsyncpa [#allocation4], 1

</llo_original>
